<compile_context>
chip_gen: v7x
topology: tpu7x:2x2x1
jax: 0.10.0
libtpu: 0.0.40
codegen_flags: <defaults>
</compile_context>

<pallas_src>
import jax
import jax.numpy as jnp
from jax.experimental import pallas as pl
from jax.experimental.pallas import tpu as pltpu

INPUT_DIM = 3 * 32 * 32  # 3072


def _round_up(x, m):
    return ((x + m - 1) // m) * m


def _sublane_multiple(dtype):
    # Minimum legal sublane multiple for a block's second-to-last dim, per dtype width.
    itemsize = jnp.dtype(dtype).itemsize
    if itemsize >= 4:
        return 8      # f32 / i32
    if itemsize == 2:
        return 16     # bf16 / f16
    return 32         # int8 / fp8


def _lr_kernel(x_ref, w_ref, o_ref):
    # x_ref: (tn, 3072) in its native dtype; w_ref: (1, 3072) f32 (resident).
    x = x_ref[...].astype(jnp.float32)   # in-kernel cast == torch's .float()
    w = w_ref[...]                       # (1, 3072), broadcast over sublanes
    # VPU multiply + XLU lane reduction; deliberately NOT an MXU matmul (HBM-bound op).
    o_ref[...] = jnp.sum(x * w, axis=-1, keepdims=True)


def lr_forward(x, weight, *, tile_n=1024):
    """Forward pass of LR: x.float().view(-1, 3072) @ W.T (no bias).

    x      : any array whose trailing dims flatten to 3072 per row (e.g. NCHW
             (N, 3, 32, 32)); any dtype — cast to f32 inside the kernel.
    weight : (1, 3072), same layout as nn.Linear(3072, 1, bias=False).weight.
    returns: (N, 1) float32
    """
    x2d = jnp.asarray(x).reshape(-1, INPUT_DIM)   # keep native dtype; cast in-kernel
    n = x2d.shape[0]
    itemsize = jnp.dtype(x2d.dtype).itemsize
    sub = _sublane_multiple(x2d.dtype)

    # Batch tile: legal sublane multiple for this dtype, no larger than needed.
    tn = min(max(tile_n, sub), _round_up(max(n, 1), sub))
    # Prefer >= 2 tiles so the "parallel" batch axis can shard across v7x's two
    # TensorCores (no-op on single-TC v5e/v6e).
    if pl.cdiv(n, tn) < 2 and n >= 2 * sub:
        tn = _round_up(pl.cdiv(n, 2), sub)

    num_tiles = pl.cdiv(n, tn)

    w_row = jnp.asarray(weight, jnp.float32).reshape(1, INPUT_DIM)

    # Explicit VMEM budget: double-buffered activation tiles + lane-padded output
    # blocks + resident weight + headroom for Mosaic internal scratch.
    act_bytes = 2 * tn * INPUT_DIM * itemsize      # double-buffered input tiles
    out_bytes = 2 * tn * 128 * 4                   # lane-padded (tn, 1) output blocks
    w_bytes = 2 * INPUT_DIM * 4                    # weight (tiny)
    vmem_limit = max(act_bytes + out_bytes + w_bytes + (8 << 20), 32 << 20)

    cost = pl.CostEstimate(
        flops=2 * n * INPUT_DIM,
        transcendentals=0,
        bytes_accessed=n * INPUT_DIM * itemsize + n * 4 + INPUT_DIM * 4,
    )

    out = pl.pallas_call(
        _lr_kernel,
        out_shape=jax.ShapeDtypeStruct((n, 1), jnp.float32),
        grid_spec=pltpu.PrefetchScalarGridSpec(
            num_scalar_prefetch=0,
            grid=(num_tiles,),
            in_specs=[
                # Activations: one batch tile per grid step, full K=3072 resident.
                # Partial last block (ragged N) handled by Pallas — no host-side pad.
                pl.BlockSpec((tn, INPUT_DIM), lambda i: (i, 0)),
                # Weight: single resident 12 KiB block, re-used every step.
                pl.BlockSpec((1, INPUT_DIM), lambda i: (0, 0)),
            ],
            out_specs=pl.BlockSpec((tn, 1), lambda i: (i, 0)),
        ),
        compiler_params=pltpu.CompilerParams(
            dimension_semantics=("parallel",),     # batch axis → megacore-shardable
            vmem_limit_bytes=vmem_limit,
        ),
        cost_estimate=cost,
    )(x2d, w_row)

    return out


def init_lr_params(key, input_dim=INPUT_DIM):
    # Deterministic init mimicking nn.Linear default: U(-1/sqrt(fan_in), 1/sqrt(fan_in)).
    bound = 1.0 / (input_dim ** 0.5)
    return jax.random.uniform(
        key, (1, input_dim), dtype=jnp.float32, minval=-bound, maxval=bound
    )


if __name__ == "__main__":
    key = jax.random.PRNGKey(0)
    k_x, k_w = jax.random.split(key)

    # Small CIFAR-like batch: (N=2, C=3, H=32, W=32), NCHW like PyTorch.
    x = jax.random.normal(k_x, (2, 3, 32, 32), dtype=jnp.float32)
    weight = init_lr_params(k_w)

    out = jax.block_until_ready(lr_forward(x, weight))

    # Reference check against plain JAX (same math as torch's linear, no bias).
    ref = x.reshape(-1, INPUT_DIM).astype(jnp.float32) @ weight.T
    assert out.shape == (2, 1)
    assert out.dtype == jnp.float32
    assert jnp.allclose(out, ref, atol=1e-4, rtol=1e-4)

    print("KERNEL_OK")
</pallas_src>

<mosaic_0001>
module attributes {stable_mosaic.version = 11 : i64} {
  func.func @_lr_kernel(%arg0: i32, %arg1: memref<8x3072xf32, #tpu.memory_space<vmem>>, %arg2: memref<1x3072xf32, #tpu.memory_space<vmem>>, %arg3: memref<8x1xf32, #tpu.memory_space<vmem>>) attributes {dimension_semantics = [#tpu.dimension_semantics<parallel>], iteration_bounds = array<i64: 1>, scalar_prefetch = 0 : i64, scratch_operands = 0 : i64, tpu.core_type = #tpu.core_type<tc>, window_params = [{transform_indices = @transform_0, window_bounds = array<i64: 8, 3072>}, {pipeline_mode = #tpu.pipeline_mode<synchronous>, transform_indices = @transform_1, window_bounds = array<i64: 1, 3072>}, {transform_indices = @transform_2, window_bounds = array<i64: 8, 1>}]} {
    %c0 = arith.constant 0 : index
    %c0_0 = arith.constant 0 : index
    %0 = vector.load %arg1[%c0, %c0_0] : memref<8x3072xf32, #tpu.memory_space<vmem>>, vector<8x3072xf32>
    %c0_1 = arith.constant 0 : index
    %c0_2 = arith.constant 0 : index
    %1 = vector.load %arg2[%c0_1, %c0_2] : memref<1x3072xf32, #tpu.memory_space<vmem>>, vector<1x3072xf32>
    %2 = vector.broadcast %1 : vector<1x3072xf32> to vector<8x3072xf32>
    %3 = arith.mulf %0, %2 : vector<8x3072xf32>
    %cst = arith.constant dense<0.000000e+00> : vector<8xf32>
    %4 = vector.multi_reduction <add>, %3, %cst [1] : vector<8x3072xf32> to vector<8xf32>
    %5 = vector.shape_cast %4 : vector<8xf32> to vector<8x1xf32>
    %c0_3 = arith.constant 0 : index
    %c0_4 = arith.constant 0 : index
    %6 = vector.load %arg3[%c0_3, %c0_4] : memref<8x1xf32, #tpu.memory_space<vmem>>, vector<8x1xf32>
    tpu.vector_store %arg3[%c0_3, %c0_4], %5 {strides = array<i32>} : memref<8x1xf32, #tpu.memory_space<vmem>>, vector<8x1xf32>,
    return
  }
  func.func @transform_0(%arg0: i32) -> (i32, i32) {
    %c0_i32 = arith.constant 0 : i32
    %c0_i32_0 = arith.constant 0 : i32
    return %arg0, %c0_i32 : i32, i32
  }
  func.func @transform_1(%arg0: i32) -> (i32, i32) {
    %c0_i32 = arith.constant 0 : i32
    %c0_i32_0 = arith.constant 0 : i32
    %c0_i32_1 = arith.constant 0 : i32
    return %c0_i32, %c0_i32_0 : i32, i32
  }
  func.func @transform_2(%arg0: i32) -> (i32, i32) {
    %c0_i32 = arith.constant 0 : i32
    %c0_i32_0 = arith.constant 0 : i32
    return %arg0, %c0_i32 : i32, i32
  }
}

</mosaic_0001>

<llo_original>
// kernel: tpu_custom_call.1
$region0: #{tpu_custom_call.1}
  #allocation0 [shape = 'u32[]', space=smem, size = 0x4, offset = 0x4, fixed_abs, tag = 'smem constant byte address 0x4 - core index']
  #allocation1 [shape = 'u32[144,128]{1,0:T(1,128)}', space=vmem, size = 0x12000, scoped, tag = 'internal scratch']
  %s0 = inlined_call_operand.hbm [shape: f32[2,3072], index: 0, kind: input, shape index: {}]
  %s1 = inlined_call_operand.hbm [shape: f32[1,3072], index: 1, kind: input, shape index: {}]
  %s2 = inlined_call_operand.vmem [shape: f32[2,1], index: 2, kind: output, shape index: {}]
  %s3 = sld [smem:[#allocation0]]
  $region56: #{tpu_custom_call.1} parent=0
    _
  %s5 = ssub.s32 1, %s3
  %s6 = scalar_select 0, %s5, %s3
  $region1: #{tpu_custom_call.1} parent=0
    #allocation2 [shape = 'u8[98304]{0}', space=vmem, size = 0x18000, scoped, tag = 'input window, operand 0, single buffered']
    #allocation3 [shape = 's32[1]{0}', space=sflag, size = 0x4, scoped, tag = 'scoped memory for tpu_custom_call.1']
    #allocation4 [shape = 'u8[12288]{0}', space=vmem, size = 0x3000, scoped, tag = 'input window, operand 1, single buffered']
    #allocation5 [shape = 's32[1]{0}', space=sflag, size = 0x4, scoped, tag = 'scoped memory for tpu_custom_call.1']
    #allocation6 [shape = 'u8[4096]{0}', space=vmem, size = 0x1000, scoped, tag = 'output window, operand 0, single buffered']
    %7 = vsyncpa [#allocation3], 0
    %8 = vsyncpa [#allocation5], 0
    // Predicated region
    $region2: #{tpu_custom_call.1} parent=1 // pred_check
      _
    $region3: #{tpu_custom_call.1} parent=1 // pred_check_branch
      %10 = sbr.rel (0) target = $region5
    $region4: #{tpu_custom_call.1} parent=1 // pred_region
      %s12 = ssub.s32 3072, 768
      %13 = vsyncadd [#allocation3], %s12
      %s14 = sshll.u32 [#allocation2], 4
      %s15 = int_to_ptr.vmem [resolvable:$true] %s14
      %20 = dma.hbm_to_vmem [thread:$0]  %s0, 768, %s15, [#allocation3], 768, 768, 48
    $region5: #{tpu_custom_call.1} parent=1 // pred_fallthru
      _
    // Predicated region
    $region6: #{tpu_custom_call.1} parent=1 // pred_check
      _
    $region7: #{tpu_custom_call.1} parent=1 // pred_check_branch
      %22 = sbr.rel (0) target = $region9
    $region8: #{tpu_custom_call.1} parent=1 // pred_region
      %s24 = ssub.s32 384, 384
      %25 = vsyncadd [#allocation5], %s24
      %s27 = sshll.u32 [#allocation4], 4
      %s28 = int_to_ptr.vmem [resolvable:$true] %s27
      %30 = dma.hbm_to_vmem [thread:$0]  %s1, 384, %s28, [#allocation5]
    $region9: #{tpu_custom_call.1} parent=1 // pred_fallthru
      _
    // Predicated region
    $region10: #{tpu_custom_call.1} parent=1 // pred_check
      _
    $region11: #{tpu_custom_call.1} parent=1 // pred_check_branch
      %32 = sbr.rel (0) target = $region13
    $region12: #{tpu_custom_call.1} parent=1 // pred_region
      %33 = dma.done [#allocation3], 3072
    $region13: #{tpu_custom_call.1} parent=1 // pred_fallthru
      _
    // Predicated region
    $region14: #{tpu_custom_call.1} parent=1 // pred_check
      _
    $region15: #{tpu_custom_call.1} parent=1 // pred_check_branch
      %35 = sbr.rel (0) target = $region17
    $region16: #{tpu_custom_call.1} parent=1 // pred_region
      %36 = dma.done [#allocation5], 384
    $region17: #{tpu_custom_call.1} parent=1 // pred_fallthru
      _
    %v37 = vld [vmem:[#allocation2] sm:$0xff]
    %v38 = vld [vmem:[#allocation2 + $0x8] sm:$0xff]
    %v39 = vld [vmem:[#allocation2 + $0x10] sm:$0xff]
    %v40 = vld [vmem:[#allocation2 + $0x18] sm:$0xff]
    %v41 = vld [vmem:[#allocation2 + $0x20] sm:$0xff]
    %v42 = vld [vmem:[#allocation2 + $0x28] sm:$0xff]
    %v43 = vld [vmem:[#allocation2 + $0x30] sm:$0xff]
    %v44 = vld [vmem:[#allocation2 + $0x38] sm:$0xff]
    %v45 = vld [vmem:[#allocation2 + $0x40] sm:$0xff]
    %v46 = vld [vmem:[#allocation2 + $0x48] sm:$0xff]
    %v47 = vld [vmem:[#allocation2 + $0x50] sm:$0xff]
    %v48 = vld [vmem:[#allocation2 + $0x58] sm:$0xff]
    %v49 = vld [vmem:[#allocation2 + $0x60] sm:$0xff]
    %v50 = vld [vmem:[#allocation2 + $0x68] sm:$0xff]
    %v51 = vld [vmem:[#allocation2 + $0x70] sm:$0xff]
    %v52 = vld [vmem:[#allocation2 + $0x78] sm:$0xff]
    %v53 = vld [vmem:[#allocation2 + $0x80] sm:$0xff]
    %v54 = vld [vmem:[#allocation2 + $0x88] sm:$0xff]
    %v55 = vld [vmem:[#allocation2 + $0x90] sm:$0xff]
    %v56 = vld [vmem:[#allocation2 + $0x98] sm:$0xff]
    %v57 = vld [vmem:[#allocation2 + $0xa0] sm:$0xff]
    %v58 = vld [vmem:[#allocation2 + $0xa8] sm:$0xff]
    %v59 = vld [vmem:[#allocation2 + $0xb0] sm:$0xff]
    %v60 = vld [vmem:[#allocation2 + $0xb8] sm:$0xff]
    %v61 = vld [vmem:[#allocation4] sm:$0xff]
    %v62 = vld [vmem:[#allocation4 + $0x8] sm:$0xff]
    %v63 = vld [vmem:[#allocation4 + $0x10] sm:$0xff]
    %v67 = vlaneseq
    %v68 = vshrl.u32 %v67, 7
    %v69 = vsub.s32 0, %v68
    %v70 = vrot.slane %v61, %v69
    %v71 = vlaneseq
    %v72 = vshrl.u32 %v71, 7
    %v73 = vsub.s32 1, %v72
    %v74 = vrot.slane %v61, %v73
    %v75 = vlaneseq
    %v76 = vshrl.u32 %v75, 7
    %v77 = vsub.s32 2, %v76
    %v78 = vrot.slane %v61, %v77
    %v79 = vlaneseq
    %v80 = vshrl.u32 %v79, 7
    %v81 = vsub.s32 3, %v80
    %v82 = vrot.slane %v61, %v81
    %v83 = vlaneseq
    %v84 = vshrl.u32 %v83, 7
    %v85 = vsub.s32 4, %v84
    %v86 = vrot.slane %v61, %v85
    %v87 = vlaneseq
    %v88 = vshrl.u32 %v87, 7
    %v89 = vsub.s32 5, %v88
    %v90 = vrot.slane %v61, %v89
    %v91 = vlaneseq
    %v92 = vshrl.u32 %v91, 7
    %v93 = vsub.s32 6, %v92
    %v94 = vrot.slane %v61, %v93
    %v95 = vlaneseq
    %v96 = vshrl.u32 %v95, 7
    %v97 = vsub.s32 7, %v96
    %v98 = vrot.slane %v61, %v97
    %v99 = vlaneseq
    %v100 = vshrl.u32 %v99, 7
    %v101 = vsub.s32 0, %v100
    %v102 = vrot.slane %v62, %v101
    %v103 = vlaneseq
    %v104 = vshrl.u32 %v103, 7
    %v105 = vsub.s32 1, %v104
    %v106 = vrot.slane %v62, %v105
    %v107 = vlaneseq
    %v108 = vshrl.u32 %v107, 7
    %v109 = vsub.s32 2, %v108
    %v110 = vrot.slane %v62, %v109
    %v111 = vlaneseq
    %v112 = vshrl.u32 %v111, 7
    %v113 = vsub.s32 3, %v112
    %v114 = vrot.slane %v62, %v113
    %v115 = vlaneseq
    %v116 = vshrl.u32 %v115, 7
    %v117 = vsub.s32 4, %v116
    %v118 = vrot.slane %v62, %v117
    %v119 = vlaneseq
    %v120 = vshrl.u32 %v119, 7
    %v121 = vsub.s32 5, %v120
    %v122 = vrot.slane %v62, %v121
    %v123 = vlaneseq
    %v124 = vshrl.u32 %v123, 7
    %v125 = vsub.s32 6, %v124
    %v126 = vrot.slane %v62, %v125
    %v127 = vlaneseq
    %v128 = vshrl.u32 %v127, 7
    %v129 = vsub.s32 7, %v128
    %v130 = vrot.slane %v62, %v129
    %v131 = vlaneseq
    %v132 = vshrl.u32 %v131, 7
    %v133 = vsub.s32 0, %v132
    %v134 = vrot.slane %v63, %v133
    %v135 = vlaneseq
    %v136 = vshrl.u32 %v135, 7
    %v137 = vsub.s32 1, %v136
    %v138 = vrot.slane %v63, %v137
    %v139 = vlaneseq
    %v140 = vshrl.u32 %v139, 7
    %v141 = vsub.s32 2, %v140
    %v142 = vrot.slane %v63, %v141
    %v143 = vlaneseq
    %v144 = vshrl.u32 %v143, 7
    %v145 = vsub.s32 3, %v144
    %v146 = vrot.slane %v63, %v145
    %v147 = vlaneseq
    %v148 = vshrl.u32 %v147, 7
    %v149 = vsub.s32 4, %v148
    %v150 = vrot.slane %v63, %v149
    %v151 = vlaneseq
    %v152 = vshrl.u32 %v151, 7
    %v153 = vsub.s32 5, %v152
    %v154 = vrot.slane %v63, %v153
    %v155 = vlaneseq
    %v156 = vshrl.u32 %v155, 7
    %v157 = vsub.s32 6, %v156
    %v158 = vrot.slane %v63, %v157
    %v159 = vlaneseq
    %v160 = vshrl.u32 %v159, 7
    %v161 = vsub.s32 7, %v160
    %v162 = vrot.slane %v63, %v161
    %v163 = vcombine.low %v70, %v74
    %v164 = vcombine.high %v70, %v74
    %v165 = vcombine.low %v78, %v82
    %v166 = vcombine.high %v78, %v82
    %v168 = vunpack.c.l.s4 1983009808
    %v169 = vunpack.c.0.s8 %v168
    %v170 = vlaneseq
    %v171 = vshrl.u32 %v170, 7
    %v172 = vsub.s32 %v169, %v171
    %v173 = vrot.slane %v163, %v172
    %v175 = vunpack.c.l.s4 1983009808
    %v176 = vunpack.c.0.s8 %v175
    %v177 = vlaneseq
    %v178 = vshrl.u32 %v177, 7
    %v179 = vsub.s32 %v176, %v178
    %v180 = vrot.slane %v164, %v179
    %v182 = vunpack.c.l.s4 1983009808
    %v183 = vunpack.c.0.s8 %v182
    %v184 = vlaneseq
    %v185 = vshrl.u32 %v184, 7
    %v186 = vsub.s32 %v183, %v185
    %v187 = vrot.slane %v165, %v186
    %v189 = vunpack.c.l.s4 1983009808
    %v190 = vunpack.c.0.s8 %v189
    %v191 = vlaneseq
    %v192 = vshrl.u32 %v191, 7
    %v193 = vsub.s32 %v190, %v192
    %v194 = vrot.slane %v166, %v193
    %v195 = vcombine.low %v173, %v187
    %v196 = vcombine.high %v173, %v187
    %v197 = vcombine.low %v180, %v194
    %v198 = vcombine.high %v180, %v194
    %v199 = vcombine.low %v86, %v90
    %v200 = vcombine.high %v86, %v90
    %v201 = vcombine.low %v94, %v98
    %v202 = vcombine.high %v94, %v98
    %v204 = vunpack.c.l.s4 1983009808
    %v205 = vunpack.c.0.s8 %v204
    %v206 = vlaneseq
    %v207 = vshrl.u32 %v206, 7
    %v208 = vsub.s32 %v205, %v207
    %v209 = vrot.slane %v199, %v208
    %v211 = vunpack.c.l.s4 1983009808
    %v212 = vunpack.c.0.s8 %v211
    %v213 = vlaneseq
    %v214 = vshrl.u32 %v213, 7
    %v215 = vsub.s32 %v212, %v214
    %v216 = vrot.slane %v200, %v215
    %v218 = vunpack.c.l.s4 1983009808
    %v219 = vunpack.c.0.s8 %v218
    %v220 = vlaneseq
    %v221 = vshrl.u32 %v220, 7
    %v222 = vsub.s32 %v219, %v221
    %v223 = vrot.slane %v201, %v222
    %v225 = vunpack.c.l.s4 1983009808
    %v226 = vunpack.c.0.s8 %v225
    %v227 = vlaneseq
    %v228 = vshrl.u32 %v227, 7
    %v229 = vsub.s32 %v226, %v228
    %v230 = vrot.slane %v202, %v229
    %v231 = vcombine.low %v209, %v223
    %v232 = vcombine.high %v209, %v223
    %v233 = vcombine.low %v216, %v230
    %v234 = vcombine.high %v216, %v230
    %v235 = vcombine.low %v102, %v106
    %v236 = vcombine.high %v102, %v106
    %v237 = vcombine.low %v110, %v114
    %v238 = vcombine.high %v110, %v114
    %v240 = vunpack.c.l.s4 1983009808
    %v241 = vunpack.c.0.s8 %v240
    %v242 = vlaneseq
    %v243 = vshrl.u32 %v242, 7
    %v244 = vsub.s32 %v241, %v243
    %v245 = vrot.slane %v235, %v244
    %v247 = vunpack.c.l.s4 1983009808
    %v248 = vunpack.c.0.s8 %v247
    %v249 = vlaneseq
    %v250 = vshrl.u32 %v249, 7
    %v251 = vsub.s32 %v248, %v250
    %v252 = vrot.slane %v236, %v251
    %v254 = vunpack.c.l.s4 1983009808
    %v255 = vunpack.c.0.s8 %v254
    %v256 = vlaneseq
    %v257 = vshrl.u32 %v256, 7
    %v258 = vsub.s32 %v255, %v257
    %v259 = vrot.slane %v237, %v258
    %v261 = vunpack.c.l.s4 1983009808
    %v262 = vunpack.c.0.s8 %v261
    %v263 = vlaneseq
    %v264 = vshrl.u32 %v263, 7
    %v265 = vsub.s32 %v262, %v264
    %v266 = vrot.slane %v238, %v265
    %v267 = vcombine.low %v245, %v259
    %v268 = vcombine.high %v245, %v259
    %v269 = vcombine.low %v252, %v266
    %v270 = vcombine.high %v252, %v266
    %v271 = vcombine.low %v118, %v122
    %v272 = vcombine.high %v118, %v122
    %v273 = vcombine.low %v126, %v130
    %v274 = vcombine.high %v126, %v130
    %v276 = vunpack.c.l.s4 1983009808
    %v277 = vunpack.c.0.s8 %v276
    %v278 = vlaneseq
    %v279 = vshrl.u32 %v278, 7
    %v280 = vsub.s32 %v277, %v279
    %v281 = vrot.slane %v271, %v280
    %v283 = vunpack.c.l.s4 1983009808
    %v284 = vunpack.c.0.s8 %v283
    %v285 = vlaneseq
    %v286 = vshrl.u32 %v285, 7
    %v287 = vsub.s32 %v284, %v286
    %v288 = vrot.slane %v272, %v287
    %v290 = vunpack.c.l.s4 1983009808
    %v291 = vunpack.c.0.s8 %v290
    %v292 = vlaneseq
    %v293 = vshrl.u32 %v292, 7
    %v294 = vsub.s32 %v291, %v293
    %v295 = vrot.slane %v273, %v294
    %v297 = vunpack.c.l.s4 1983009808
    %v298 = vunpack.c.0.s8 %v297
    %v299 = vlaneseq
    %v300 = vshrl.u32 %v299, 7
    %v301 = vsub.s32 %v298, %v300
    %v302 = vrot.slane %v274, %v301
    %v303 = vcombine.low %v281, %v295
    %v304 = vcombine.high %v281, %v295
    %v305 = vcombine.low %v288, %v302
    %v306 = vcombine.high %v288, %v302
    %v307 = vcombine.low %v134, %v138
    %v308 = vcombine.high %v134, %v138
    %v309 = vcombine.low %v142, %v146
    %v310 = vcombine.high %v142, %v146
    %v312 = vunpack.c.l.s4 1983009808
    %v313 = vunpack.c.0.s8 %v312
    %v314 = vlaneseq
    %v315 = vshrl.u32 %v314, 7
    %v316 = vsub.s32 %v313, %v315
    %v317 = vrot.slane %v307, %v316
    %v319 = vunpack.c.l.s4 1983009808
    %v320 = vunpack.c.0.s8 %v319
    %v321 = vlaneseq
    %v322 = vshrl.u32 %v321, 7
    %v323 = vsub.s32 %v320, %v322
    %v324 = vrot.slane %v308, %v323
    %v326 = vunpack.c.l.s4 1983009808
    %v327 = vunpack.c.0.s8 %v326
    %v328 = vlaneseq
    %v329 = vshrl.u32 %v328, 7
    %v330 = vsub.s32 %v327, %v329
    %v331 = vrot.slane %v309, %v330
    %v333 = vunpack.c.l.s4 1983009808
    %v334 = vunpack.c.0.s8 %v333
    %v335 = vlaneseq
    %v336 = vshrl.u32 %v335, 7
    %v337 = vsub.s32 %v334, %v336
    %v338 = vrot.slane %v310, %v337
    %v339 = vcombine.low %v317, %v331
    %v340 = vcombine.high %v317, %v331
    %v341 = vcombine.low %v324, %v338
    %v342 = vcombine.high %v324, %v338
    %v343 = vcombine.low %v150, %v154
    %v344 = vcombine.high %v150, %v154
    %v345 = vcombine.low %v158, %v162
    %v346 = vcombine.high %v158, %v162
    %v348 = vunpack.c.l.s4 1983009808
    %v349 = vunpack.c.0.s8 %v348
    %v350 = vlaneseq
    %v351 = vshrl.u32 %v350, 7
    %v352 = vsub.s32 %v349, %v351
    %v353 = vrot.slane %v343, %v352
    %v355 = vunpack.c.l.s4 1983009808
    %v356 = vunpack.c.0.s8 %v355
    %v357 = vlaneseq
    %v358 = vshrl.u32 %v357, 7
    %v359 = vsub.s32 %v356, %v358
    %v360 = vrot.slane %v344, %v359
    %v362 = vunpack.c.l.s4 1983009808
    %v363 = vunpack.c.0.s8 %v362
    %v364 = vlaneseq
    %v365 = vshrl.u32 %v364, 7
    %v366 = vsub.s32 %v363, %v365
    %v367 = vrot.slane %v345, %v366
    %v369 = vunpack.c.l.s4 1983009808
    %v370 = vunpack.c.0.s8 %v369
    %v371 = vlaneseq
    %v372 = vshrl.u32 %v371, 7
    %v373 = vsub.s32 %v370, %v372
    %v374 = vrot.slane %v346, %v373
    %v375 = vcombine.low %v353, %v367
    %v376 = vcombine.high %v353, %v367
    %v377 = vcombine.low %v360, %v374
    %v378 = vcombine.high %v360, %v374
    %v403 = vmul.f32 %v37, %v195
    %v404 = vmul.f32 %v38, %v231
    %v405 = vmul.f32 %v39, %v267
    %v406 = vmul.f32 %v40, %v303
    %v407 = vmul.f32 %v41, %v339
    %v408 = vmul.f32 %v42, %v375
    %v409 = vmul.f32 %v43, %v196
    %v410 = vmul.f32 %v44, %v232
    %v411 = vmul.f32 %v45, %v268
    %v412 = vmul.f32 %v46, %v304
    %v413 = vmul.f32 %v47, %v340
    %v414 = vmul.f32 %v48, %v376
    %v415 = vmul.f32 %v49, %v197
    %v416 = vmul.f32 %v50, %v233
    %v417 = vmul.f32 %v51, %v269
    %v418 = vmul.f32 %v52, %v305
    %v419 = vmul.f32 %v53, %v341
    %v420 = vmul.f32 %v54, %v377
    %v421 = vmul.f32 %v55, %v198
    %v422 = vmul.f32 %v56, %v234
    %v423 = vmul.f32 %v57, %v270
    %v424 = vmul.f32 %v58, %v306
    %v425 = vmul.f32 %v59, %v342
    %v426 = vmul.f32 %v60, %v378
    %v451 = vcombine.low %v403, %v409
    %v452 = vcombine.high %v403, %v409
    %v453 = vcombine.low %v415, %v421
    %v454 = vcombine.high %v415, %v421
    %v456 = vunpack.c.l.s4 1983009808
    %v457 = vunpack.c.0.s8 %v456
    %v458 = vlaneseq
    %v459 = vshrl.u32 %v458, 7
    %v460 = vsub.s32 %v457, %v459
    %v461 = vrot.slane %v451, %v460
    %v463 = vunpack.c.l.s4 1983009808
    %v464 = vunpack.c.0.s8 %v463
    %v465 = vlaneseq
    %v466 = vshrl.u32 %v465, 7
    %v467 = vsub.s32 %v464, %v466
    %v468 = vrot.slane %v452, %v467
    %v470 = vunpack.c.l.s4 1983009808
    %v471 = vunpack.c.0.s8 %v470
    %v472 = vlaneseq
    %v473 = vshrl.u32 %v472, 7
    %v474 = vsub.s32 %v471, %v473
    %v475 = vrot.slane %v453, %v474
    %v477 = vunpack.c.l.s4 1983009808
    %v478 = vunpack.c.0.s8 %v477
    %v479 = vlaneseq
    %v480 = vshrl.u32 %v479, 7
    %v481 = vsub.s32 %v478, %v480
    %v482 = vrot.slane %v454, %v481
    %v483 = vcombine.low %v461, %v475
    %v484 = vcombine.high %v461, %v475
    %v485 = vcombine.low %v468, %v482
    %v486 = vcombine.high %v468, %v482
    %v487 = vcombine.low %v404, %v410
    %v488 = vcombine.high %v404, %v410
    %v489 = vcombine.low %v416, %v422
    %v490 = vcombine.high %v416, %v422
    %v492 = vunpack.c.l.s4 1983009808
    %v493 = vunpack.c.0.s8 %v492
    %v494 = vlaneseq
    %v495 = vshrl.u32 %v494, 7
    %v496 = vsub.s32 %v493, %v495
    %v497 = vrot.slane %v487, %v496
    %v499 = vunpack.c.l.s4 1983009808
    %v500 = vunpack.c.0.s8 %v499
    %v501 = vlaneseq
    %v502 = vshrl.u32 %v501, 7
    %v503 = vsub.s32 %v500, %v502
    %v504 = vrot.slane %v488, %v503
    %v506 = vunpack.c.l.s4 1983009808
    %v507 = vunpack.c.0.s8 %v506
    %v508 = vlaneseq
    %v509 = vshrl.u32 %v508, 7
    %v510 = vsub.s32 %v507, %v509
    %v511 = vrot.slane %v489, %v510
    %v513 = vunpack.c.l.s4 1983009808
    %v514 = vunpack.c.0.s8 %v513
    %v515 = vlaneseq
    %v516 = vshrl.u32 %v515, 7
    %v517 = vsub.s32 %v514, %v516
    %v518 = vrot.slane %v490, %v517
    %v519 = vcombine.low %v497, %v511
    %v520 = vcombine.high %v497, %v511
    %v521 = vcombine.low %v504, %v518
    %v522 = vcombine.high %v504, %v518
    %v523 = vcombine.low %v405, %v411
    %v524 = vcombine.high %v405, %v411
    %v525 = vcombine.low %v417, %v423
    %v526 = vcombine.high %v417, %v423
    %v528 = vunpack.c.l.s4 1983009808
    %v529 = vunpack.c.0.s8 %v528
    %v530 = vlaneseq
    %v531 = vshrl.u32 %v530, 7
    %v532 = vsub.s32 %v529, %v531
    %v533 = vrot.slane %v523, %v532
    %v535 = vunpack.c.l.s4 1983009808
    %v536 = vunpack.c.0.s8 %v535
    %v537 = vlaneseq
    %v538 = vshrl.u32 %v537, 7
    %v539 = vsub.s32 %v536, %v538
    %v540 = vrot.slane %v524, %v539
    %v542 = vunpack.c.l.s4 1983009808
    %v543 = vunpack.c.0.s8 %v542
    %v544 = vlaneseq
    %v545 = vshrl.u32 %v544, 7
    %v546 = vsub.s32 %v543, %v545
    %v547 = vrot.slane %v525, %v546
    %v549 = vunpack.c.l.s4 1983009808
    %v550 = vunpack.c.0.s8 %v549
    %v551 = vlaneseq
    %v552 = vshrl.u32 %v551, 7
    %v553 = vsub.s32 %v550, %v552
    %v554 = vrot.slane %v526, %v553
    %v555 = vcombine.low %v533, %v547
    %v556 = vcombine.high %v533, %v547
    %v557 = vcombine.low %v540, %v554
    %v558 = vcombine.high %v540, %v554
    %v559 = vcombine.low %v406, %v412
    %v560 = vcombine.high %v406, %v412
    %v561 = vcombine.low %v418, %v424
    %v562 = vcombine.high %v418, %v424
    %v564 = vunpack.c.l.s4 1983009808
    %v565 = vunpack.c.0.s8 %v564
    %v566 = vlaneseq
    %v567 = vshrl.u32 %v566, 7
    %v568 = vsub.s32 %v565, %v567
    %v569 = vrot.slane %v559, %v568
    %v571 = vunpack.c.l.s4 1983009808
    %v572 = vunpack.c.0.s8 %v571
    %v573 = vlaneseq
    %v574 = vshrl.u32 %v573, 7
    %v575 = vsub.s32 %v572, %v574
    %v576 = vrot.slane %v560, %v575
    %v578 = vunpack.c.l.s4 1983009808
    %v579 = vunpack.c.0.s8 %v578
    %v580 = vlaneseq
    %v581 = vshrl.u32 %v580, 7
    %v582 = vsub.s32 %v579, %v581
    %v583 = vrot.slane %v561, %v582
    %v585 = vunpack.c.l.s4 1983009808
    %v586 = vunpack.c.0.s8 %v585
    %v587 = vlaneseq
    %v588 = vshrl.u32 %v587, 7
    %v589 = vsub.s32 %v586, %v588
    %v590 = vrot.slane %v562, %v589
    %v591 = vcombine.low %v569, %v583
    %v592 = vcombine.high %v569, %v583
    %v593 = vcombine.low %v576, %v590
    %v594 = vcombine.high %v576, %v590
    %v595 = vcombine.low %v407, %v413
    %v596 = vcombine.high %v407, %v413
    %v597 = vcombine.low %v419, %v425
    %v598 = vcombine.high %v419, %v425
    %v600 = vunpack.c.l.s4 1983009808
    %v601 = vunpack.c.0.s8 %v600
    %v602 = vlaneseq
    %v603 = vshrl.u32 %v602, 7
    %v604 = vsub.s32 %v601, %v603
    %v605 = vrot.slane %v595, %v604
    %v607 = vunpack.c.l.s4 1983009808
    %v608 = vunpack.c.0.s8 %v607
    %v609 = vlaneseq
    %v610 = vshrl.u32 %v609, 7
    %v611 = vsub.s32 %v608, %v610
    %v612 = vrot.slane %v596, %v611
    %v614 = vunpack.c.l.s4 1983009808
    %v615 = vunpack.c.0.s8 %v614
    %v616 = vlaneseq
    %v617 = vshrl.u32 %v616, 7
    %v618 = vsub.s32 %v615, %v617
    %v619 = vrot.slane %v597, %v618
    %v621 = vunpack.c.l.s4 1983009808
    %v622 = vunpack.c.0.s8 %v621
    %v623 = vlaneseq
    %v624 = vshrl.u32 %v623, 7
    %v625 = vsub.s32 %v622, %v624
    %v626 = vrot.slane %v598, %v625
    %v627 = vcombine.low %v605, %v619
    %v628 = vcombine.high %v605, %v619
    %v629 = vcombine.low %v612, %v626
    %v630 = vcombine.high %v612, %v626
    %v631 = vcombine.low %v408, %v414
    %v632 = vcombine.high %v408, %v414
    %v633 = vcombine.low %v420, %v426
    %v634 = vcombine.high %v420, %v426
    %v636 = vunpack.c.l.s4 1983009808
    %v637 = vunpack.c.0.s8 %v636
    %v638 = vlaneseq
    %v639 = vshrl.u32 %v638, 7
    %v640 = vsub.s32 %v637, %v639
    %v641 = vrot.slane %v631, %v640
    %v643 = vunpack.c.l.s4 1983009808
    %v644 = vunpack.c.0.s8 %v643
    %v645 = vlaneseq
    %v646 = vshrl.u32 %v645, 7
    %v647 = vsub.s32 %v644, %v646
    %v648 = vrot.slane %v632, %v647
    %v650 = vunpack.c.l.s4 1983009808
    %v651 = vunpack.c.0.s8 %v650
    %v652 = vlaneseq
    %v653 = vshrl.u32 %v652, 7
    %v654 = vsub.s32 %v651, %v653
    %v655 = vrot.slane %v633, %v654
    %v657 = vunpack.c.l.s4 1983009808
    %v658 = vunpack.c.0.s8 %v657
    %v659 = vlaneseq
    %v660 = vshrl.u32 %v659, 7
    %v661 = vsub.s32 %v658, %v660
    %v662 = vrot.slane %v634, %v661
    %v663 = vcombine.low %v641, %v655
    %v664 = vcombine.high %v641, %v655
    %v665 = vcombine.low %v648, %v662
    %v666 = vcombine.high %v648, %v662
    %v691 = vadd.f32 %v483, %v484
    %v692 = vadd.f32 %v691, %v485
    %v693 = vadd.f32 %v692, %v486
    %v694 = vadd.f32 %v693, %v519
    %v695 = vadd.f32 %v694, %v520
    %v696 = vadd.f32 %v695, %v521
    %v697 = vadd.f32 %v696, %v522
    %v698 = vadd.f32 %v697, %v555
    %v699 = vadd.f32 %v698, %v556
    %v700 = vadd.f32 %v699, %v557
    %v701 = vadd.f32 %v700, %v558
    %v702 = vadd.f32 %v701, %v591
    %v703 = vadd.f32 %v702, %v592
    %v704 = vadd.f32 %v703, %v593
    %v705 = vadd.f32 %v704, %v594
    %v706 = vadd.f32 %v705, %v627
    %v707 = vadd.f32 %v706, %v628
    %v708 = vadd.f32 %v707, %v629
    %v709 = vadd.f32 %v708, %v630
    %v710 = vadd.f32 %v709, %v663
    %v711 = vadd.f32 %v710, %v664
    %v712 = vadd.f32 %v711, %v665
    %v713 = vadd.f32 %v712, %v666
    %714 = vadd.xlane.f32.xlu0 %v713
    %v715 = vpop.xlane.xlu0 %714
    %vm716 = vcmask 7168
    %717 = vst.msk [vmem:[#allocation6] sm:$0xff] %vm716, %v715
    // Predicated region
    $region18: #{tpu_custom_call.1} parent=1 // pred_check
      _
    $region19: #{tpu_custom_call.1} parent=1 // pred_check_branch
      %719 = sbr.rel (0) target = $region21
    $region20: #{tpu_custom_call.1} parent=1 // pred_region
      // Predicated region
      $region22: #{tpu_custom_call.1} parent=20 // pred_check
        _
      $region23: #{tpu_custom_call.1} parent=20 // pred_check_branch
        %721 = sbr.rel (0) target = $region25
      $region24: #{tpu_custom_call.1} parent=20 // pred_region
        // Predicated region
        $region26: #{tpu_custom_call.1} parent=24 // pred_check
          _
        $region27: #{tpu_custom_call.1} parent=24 // pred_check_branch
          %723 = sbr.rel target = $region29
        $region28: #{tpu_custom_call.1} parent=24 // pred_region
          // Predicated region
          $region41: #{tpu_custom_call.1} parent=28 // pred_check
            _
          $region42: #{tpu_custom_call.1} parent=28 // pred_check_branch
            %738 = sbr.rel (0) target = $region44
          $region43: #{tpu_custom_call.1} parent=28 // pred_region
            loop: start=0, step=1, limit=1
            $region45: #{tpu_custom_call.1} parent=43 // loop_pre_header
              _
            $region46: #{tpu_custom_call.1} parent=43 // loop_header
              %s741 = sphi 0, %s745
              %p742 = scmp.ge.s32.totalorder %s741, 1
              %s746 = sphi [#allocation6], [#allocation6]
              %s747 = sphi %s2, %s2
            $region47: #{tpu_custom_call.1} parent=43 // loop_header_branch
              %744 = sbr.rel (%p742) target = $region51
            $region48: #{tpu_custom_call.1} parent=43 // loop_body
              %v748 = vld [vmem:[%s746] sm:$0x3]
              %749 = vst [vmem:[%s747] sm:$0x3] %v748
            $region49: #{tpu_custom_call.1} parent=43 // loop_footer
              %s745 = sadd.s32 1, %s741
            $region50: #{tpu_custom_call.1} parent=43 // loop_footer_branch
              %740 = sbr.rel target = $region46
            $region51: #{tpu_custom_call.1} parent=43 // loop_exit
              _
          $region44: #{tpu_custom_call.1} parent=28 // pred_fallthru
            _
        $region29: #{tpu_custom_call.1} parent=24 // pred_fallthru
          _
        // Predicated region
        $region30: #{tpu_custom_call.1} parent=24 // pred_check
          _
        $region31: #{tpu_custom_call.1} parent=24 // pred_check_branch
          %725 = sbr.rel (0) target = $region33
        $region32: #{tpu_custom_call.1} parent=24 // pred_region
          loop: start=0, step=1, limit=1
          $region34: #{tpu_custom_call.1} parent=32 // loop_pre_header
            _
          $region35: #{tpu_custom_call.1} parent=32 // loop_header
            %s728 = sphi 0, %s732
            %p729 = scmp.ge.s32.totalorder %s728, 1
            %s733 = sphi [#allocation6], [#allocation6]
            %s734 = sphi %s2, %s2
          $region36: #{tpu_custom_call.1} parent=32 // loop_header_branch
            %731 = sbr.rel (%p729) target = $region40
          $region37: #{tpu_custom_call.1} parent=32 // loop_body
            %v735 = vld [vmem:[%s733] sm:$0x3]
            %736 = vst [vmem:[%s734] sm:$0x3] %v735
          $region38: #{tpu_custom_call.1} parent=32 // loop_footer
            %s732 = sadd.s32 1, %s728
          $region39: #{tpu_custom_call.1} parent=32 // loop_footer_branch
            %727 = sbr.rel target = $region35
          $region40: #{tpu_custom_call.1} parent=32 // loop_exit
            _
        $region33: #{tpu_custom_call.1} parent=24 // pred_fallthru
          _
      $region25: #{tpu_custom_call.1} parent=20 // pred_fallthru
        _
      %750 = vnop
    $region21: #{tpu_custom_call.1} parent=1 // pred_fallthru
      _
    // Predicated region
    $region52: #{tpu_custom_call.1} parent=1 // pred_check
      _
    $region53: #{tpu_custom_call.1} parent=1 // pred_check_branch
      %752 = sbr.rel (0) target = $region55
    $region54: #{tpu_custom_call.1} parent=1 // pred_region
      _
    $region55: #{tpu_custom_call.1} parent=1 // pred_fallthru
      _
    %753 = vsyncpa [#allocation3], 1
    %754 = vsyncpa [#allocation5], 1

</llo_original>
